<compile_context>
chip_gen: v6e
topology: v6e:2x2x1
jax: 0.10.0
libtpu: 0.0.40
codegen_flags: <defaults>
</compile_context>

<pallas_src>
import functools
import math

import jax
import jax.numpy as jnp
from jax.experimental import pallas as pl
from jax.experimental.pallas import tpu as pltpu


def rnn_kernel(x_ref, w_ref, out_ref, *, T, B_pad, D_ext, H):
    """Whole-sequence RNN + final Linear, single invocation, everything resident.

    x_ref   : (T*B_pad, D_ext) bf16  time-major, batch padded to 8, with a
                                     ones column at D_in (activates the folded
                                     bias row) and zero padding up to D_ext.
    w_ref   : (D_ext + 2H + 8, H) bf16 packed weight slab:
                rows [0, D_ext)              W_ih^T, bias row, zero rows
                rows [D_ext, D_ext+H)        W_hh^T
                rows [D_ext+H, D_ext+2H)     W_fc^T (lane-padded O -> H)
                rows [D_ext+2H, D_ext+2H+8)  b_fc in row 0 (lane-padded)
    out_ref : (B_pad, H) f32  fc(h_T) in cols [0, O), zeros elsewhere.
    """
    w_ih = w_ref[0:D_ext, :]                                     # (D_ext, H)
    w_hh = w_ref[D_ext:D_ext + H, :]                             # (H, H)
    w_fc = w_ref[D_ext + H:D_ext + 2 * H, :]                     # (H, H)
    b_fc = w_ref[D_ext + 2 * H:D_ext + 2 * H + 1, :].astype(jnp.float32)

    # Hoisted input projection with the bias folded in: ONE MXU matmul covers
    # every timestep; only the h-recurrence below remains serial.
    u = jnp.dot(x_ref[...], w_ih,
                preferred_element_type=jnp.float32)              # (T*B_pad, H) f32

    h = jnp.zeros((B_pad, H), jnp.float32)                       # PyTorch h0 = 0

    # Serial recurrence, fully unrolled at trace time (T small & static).
    # Aligned 8-sublane static slices of u -> each step is one small bf16 MXU
    # matmul + f32 VPU add + EUP tanh, nothing else on the critical chain.
    for t in range(T):
        h = jnp.tanh(u[t * B_pad:(t + 1) * B_pad, :]
                     + jnp.dot(h.astype(jnp.bfloat16), w_hh,
                               preferred_element_type=jnp.float32))

    out_ref[...] = (jnp.dot(h.astype(jnp.bfloat16), w_fc,
                            preferred_element_type=jnp.float32) + b_fc)


def _round_up(n, m):
    return (n + m - 1) // m * m


def _pack_weights(params):
    """Pack all weights/biases into one sublane-aligned bf16 slab (1 DMA)."""
    D_in, H = params["w_ih_t"].shape
    O = params["w_fc_t"].shape[1]
    assert O <= H, "fc wider than hidden not handled by the packed slab"
    D_ext = _round_up(D_in + 1, 8)

    w_ih_blk = jnp.zeros((D_ext, H), jnp.float32)
    w_ih_blk = w_ih_blk.at[:D_in, :].set(params["w_ih_t"])
    w_ih_blk = w_ih_blk.at[D_in, :].set((params["b_ih"] + params["b_hh"])[0])

    w_fc_blk = jnp.zeros((H, H), jnp.float32).at[:, :O].set(params["w_fc_t"])
    b_fc_blk = jnp.zeros((8, H), jnp.float32).at[0, :O].set(params["b_fc"][0])

    slab = jnp.concatenate(
        [w_ih_blk, params["w_hh_t"], w_fc_blk, b_fc_blk], axis=0)
    return slab.astype(jnp.bfloat16), D_ext


@jax.jit
def rnn_model_forward(x_btd, params):
    """x_btd: (B, T, D_in) float32, batch_first like the PyTorch module."""
    B, T, D_in = x_btd.shape
    H = params["w_hh_t"].shape[0]
    O = params["w_fc_t"].shape[1]
    B_pad = 8                                   # sublane-align the batch

    slab, D_ext = _pack_weights(params)

    # Time-major, batch/feature-padded input with a ones column feeding the
    # folded bias row.  Fuses into one small XLA prep op under jit; ideally
    # the upstream producer emits this layout directly.
    x_tbd = jnp.transpose(x_btd, (1, 0, 2))                     # (T, B, D_in)
    x_ext = jnp.zeros((T, B_pad, D_ext), jnp.float32)
    x_ext = x_ext.at[:, :B, :D_in].set(x_tbd)
    x_ext = x_ext.at[:, :, D_in].set(1.0)                       # ones column
    x_flat = x_ext.reshape(T * B_pad, D_ext).astype(jnp.bfloat16)

    cost = pl.CostEstimate(
        flops=2 * (T * B_pad * D_ext * H + T * B_pad * H * H + B_pad * H * H),
        transcendentals=T * B_pad * H,
        bytes_accessed=x_flat.size * 2 + slab.size * 2 + B_pad * H * 4)

    vmem = pl.BlockSpec(memory_space=pltpu.MemorySpace.VMEM)
    out_pad = pl.pallas_call(
        functools.partial(rnn_kernel, T=T, B_pad=B_pad, D_ext=D_ext, H=H),
        out_shape=jax.ShapeDtypeStruct((B_pad, H), jnp.float32),
        in_specs=[vmem, vmem],        # whole arrays resident in VMEM, no grid
        out_specs=vmem,
        cost_estimate=cost,
    )(x_flat, slab)

    return out_pad[:B, :O]


def init_params(key, input_size, hidden_size, output_size):
    """Deterministic init mimicking PyTorch's U(-1/sqrt(H), 1/sqrt(H))."""
    ks = jax.random.split(key, 6)
    k_rnn = 1.0 / math.sqrt(hidden_size)
    k_fc = 1.0 / math.sqrt(hidden_size)
    u = lambda k, shape, b: jax.random.uniform(k, shape, jnp.float32, -b, b)
    return {
        # stored transposed so the kernel does x @ W^T as a plain matmul
        "w_ih_t": u(ks[0], (input_size, hidden_size), k_rnn),
        "w_hh_t": u(ks[1], (hidden_size, hidden_size), k_rnn),
        "b_ih":   u(ks[2], (1, hidden_size), k_rnn),
        "b_hh":   u(ks[3], (1, hidden_size), k_rnn),
        "w_fc_t": u(ks[4], (hidden_size, output_size), k_fc),
        "b_fc":   u(ks[5], (1, output_size), k_fc),
    }


def reference_forward(x_btd, params):
    """Pure-JAX f32 reference of the PyTorch forward, for a sanity check."""
    B, T, _ = x_btd.shape
    H = params["w_hh_t"].shape[0]
    h = jnp.zeros((B, H), jnp.float32)
    for t in range(T):
        h = jnp.tanh(x_btd[:, t, :] @ params["w_ih_t"]
                     + h @ params["w_hh_t"]
                     + params["b_ih"] + params["b_hh"])
    return h @ params["w_fc_t"] + params["b_fc"]


if __name__ == "__main__":
    B, T = 2, 8
    input_size, hidden_size, output_size = 8, 32, 16

    key = jax.random.PRNGKey(0)
    k_x, k_p = jax.random.split(key)
    x = jax.random.normal(k_x, (B, T, input_size), jnp.float32)
    params = init_params(k_p, input_size, hidden_size, output_size)

    out = rnn_model_forward(x, params)
    out = jax.block_until_ready(out)

    ref = reference_forward(x, params)
    assert out.shape == (B, output_size)
    # bf16 matmul operands (f32 accumulation) vs. the pure-f32 reference.
    assert jnp.allclose(out, ref, atol=5e-2, rtol=5e-2), \
        float(jnp.max(jnp.abs(out - ref)))

    print("KERNEL_OK")
</pallas_src>

<mosaic_0001>
module attributes {stable_mosaic.version = 11 : i64} {
  func.func @rnn_kernel(%arg0: memref<64x16xbf16, #tpu.memory_space<vmem>>, %arg1: memref<88x32xbf16, #tpu.memory_space<vmem>>, %arg2: memref<8x32xf32, #tpu.memory_space<vmem>>) attributes {dimension_semantics = [], scalar_prefetch = 0 : i64, scratch_operands = 0 : i64, tpu.core_type = #tpu.core_type<tc>} {
    %c0 = arith.constant 0 : index
    %c0_0 = arith.constant 0 : index
    %0 = vector.load %arg1[%c0, %c0_0] : memref<88x32xbf16, #tpu.memory_space<vmem>>, vector<16x32xbf16>
    %c16 = arith.constant 16 : index
    %c0_1 = arith.constant 0 : index
    %1 = vector.load %arg1[%c16, %c0_1] : memref<88x32xbf16, #tpu.memory_space<vmem>>, vector<32x32xbf16>
    %c48 = arith.constant 48 : index
    %c0_2 = arith.constant 0 : index
    %2 = vector.load %arg1[%c48, %c0_2] : memref<88x32xbf16, #tpu.memory_space<vmem>>, vector<32x32xbf16>
    %c80 = arith.constant 80 : index
    %c0_3 = arith.constant 0 : index
    %3 = vector.load %arg1[%c80, %c0_3] : memref<88x32xbf16, #tpu.memory_space<vmem>>, vector<1x32xbf16>
    %4 = arith.extf %3 : vector<1x32xbf16> to vector<1x32xf32>
    %c0_4 = arith.constant 0 : index
    %c0_5 = arith.constant 0 : index
    %5 = vector.load %arg0[%c0_4, %c0_5] : memref<64x16xbf16, #tpu.memory_space<vmem>>, vector<64x16xbf16>
    %cst = arith.constant dense<0.000000e+00> : vector<64x32xf32>
    %6 = tpu.matmul %5, %0, %cst {dimension_numbers = #tpu.dot_dimension_numbers<[1], [0], [0], [1], [0, 0, 1, 1], [], []>} : vector<64x16xbf16>, vector<16x32xbf16>, vector<64x32xf32> -> vector<64x32xf32>
    %cst_6 = arith.constant 0.000000e+00 : f32
    %7 = vector.broadcast %cst_6 : f32 to vector<8x32xf32>
    %8 = vector.extract_strided_slice %6 {offsets = [0, 0], sizes = [8, 32], strides = [1, 1]} : vector<64x32xf32> to vector<8x32xf32>
    %9 = arith.truncf %7 : vector<8x32xf32> to vector<8x32xbf16>
    %cst_7 = arith.constant dense<0.000000e+00> : vector<8x32xf32>
    %10 = tpu.matmul %9, %1, %cst_7 {dimension_numbers = #tpu.dot_dimension_numbers<[1], [0], [0], [1], [0, 0, 1, 1], [], []>} : vector<8x32xbf16>, vector<32x32xbf16>, vector<8x32xf32> -> vector<8x32xf32>
    %11 = arith.addf %8, %10 : vector<8x32xf32>
    %12 = math.tanh %11 : vector<8x32xf32>
    %13 = vector.extract_strided_slice %6 {offsets = [8, 0], sizes = [8, 32], strides = [1, 1]} : vector<64x32xf32> to vector<8x32xf32>
    %14 = arith.truncf %12 : vector<8x32xf32> to vector<8x32xbf16>
    %cst_8 = arith.constant dense<0.000000e+00> : vector<8x32xf32>
    %15 = tpu.matmul %14, %1, %cst_8 {dimension_numbers = #tpu.dot_dimension_numbers<[1], [0], [0], [1], [0, 0, 1, 1], [], []>} : vector<8x32xbf16>, vector<32x32xbf16>, vector<8x32xf32> -> vector<8x32xf32>
    %16 = arith.addf %13, %15 : vector<8x32xf32>
    %17 = math.tanh %16 : vector<8x32xf32>
    %18 = vector.extract_strided_slice %6 {offsets = [16, 0], sizes = [8, 32], strides = [1, 1]} : vector<64x32xf32> to vector<8x32xf32>
    %19 = arith.truncf %17 : vector<8x32xf32> to vector<8x32xbf16>
    %cst_9 = arith.constant dense<0.000000e+00> : vector<8x32xf32>
    %20 = tpu.matmul %19, %1, %cst_9 {dimension_numbers = #tpu.dot_dimension_numbers<[1], [0], [0], [1], [0, 0, 1, 1], [], []>} : vector<8x32xbf16>, vector<32x32xbf16>, vector<8x32xf32> -> vector<8x32xf32>
    %21 = arith.addf %18, %20 : vector<8x32xf32>
    %22 = math.tanh %21 : vector<8x32xf32>
    %23 = vector.extract_strided_slice %6 {offsets = [24, 0], sizes = [8, 32], strides = [1, 1]} : vector<64x32xf32> to vector<8x32xf32>
    %24 = arith.truncf %22 : vector<8x32xf32> to vector<8x32xbf16>
    %cst_10 = arith.constant dense<0.000000e+00> : vector<8x32xf32>
    %25 = tpu.matmul %24, %1, %cst_10 {dimension_numbers = #tpu.dot_dimension_numbers<[1], [0], [0], [1], [0, 0, 1, 1], [], []>} : vector<8x32xbf16>, vector<32x32xbf16>, vector<8x32xf32> -> vector<8x32xf32>
    %26 = arith.addf %23, %25 : vector<8x32xf32>
    %27 = math.tanh %26 : vector<8x32xf32>
    %28 = vector.extract_strided_slice %6 {offsets = [32, 0], sizes = [8, 32], strides = [1, 1]} : vector<64x32xf32> to vector<8x32xf32>
    %29 = arith.truncf %27 : vector<8x32xf32> to vector<8x32xbf16>
    %cst_11 = arith.constant dense<0.000000e+00> : vector<8x32xf32>
    %30 = tpu.matmul %29, %1, %cst_11 {dimension_numbers = #tpu.dot_dimension_numbers<[1], [0], [0], [1], [0, 0, 1, 1], [], []>} : vector<8x32xbf16>, vector<32x32xbf16>, vector<8x32xf32> -> vector<8x32xf32>
    %31 = arith.addf %28, %30 : vector<8x32xf32>
    %32 = math.tanh %31 : vector<8x32xf32>
    %33 = vector.extract_strided_slice %6 {offsets = [40, 0], sizes = [8, 32], strides = [1, 1]} : vector<64x32xf32> to vector<8x32xf32>
    %34 = arith.truncf %32 : vector<8x32xf32> to vector<8x32xbf16>
    %cst_12 = arith.constant dense<0.000000e+00> : vector<8x32xf32>
    %35 = tpu.matmul %34, %1, %cst_12 {dimension_numbers = #tpu.dot_dimension_numbers<[1], [0], [0], [1], [0, 0, 1, 1], [], []>} : vector<8x32xbf16>, vector<32x32xbf16>, vector<8x32xf32> -> vector<8x32xf32>
    %36 = arith.addf %33, %35 : vector<8x32xf32>
    %37 = math.tanh %36 : vector<8x32xf32>
    %38 = vector.extract_strided_slice %6 {offsets = [48, 0], sizes = [8, 32], strides = [1, 1]} : vector<64x32xf32> to vector<8x32xf32>
    %39 = arith.truncf %37 : vector<8x32xf32> to vector<8x32xbf16>
    %cst_13 = arith.constant dense<0.000000e+00> : vector<8x32xf32>
    %40 = tpu.matmul %39, %1, %cst_13 {dimension_numbers = #tpu.dot_dimension_numbers<[1], [0], [0], [1], [0, 0, 1, 1], [], []>} : vector<8x32xbf16>, vector<32x32xbf16>, vector<8x32xf32> -> vector<8x32xf32>
    %41 = arith.addf %38, %40 : vector<8x32xf32>
    %42 = math.tanh %41 : vector<8x32xf32>
    %43 = vector.extract_strided_slice %6 {offsets = [56, 0], sizes = [8, 32], strides = [1, 1]} : vector<64x32xf32> to vector<8x32xf32>
    %44 = arith.truncf %42 : vector<8x32xf32> to vector<8x32xbf16>
    %cst_14 = arith.constant dense<0.000000e+00> : vector<8x32xf32>
    %45 = tpu.matmul %44, %1, %cst_14 {dimension_numbers = #tpu.dot_dimension_numbers<[1], [0], [0], [1], [0, 0, 1, 1], [], []>} : vector<8x32xbf16>, vector<32x32xbf16>, vector<8x32xf32> -> vector<8x32xf32>
    %46 = arith.addf %43, %45 : vector<8x32xf32>
    %47 = math.tanh %46 : vector<8x32xf32>
    %48 = arith.truncf %47 : vector<8x32xf32> to vector<8x32xbf16>
    %cst_15 = arith.constant dense<0.000000e+00> : vector<8x32xf32>
    %49 = tpu.matmul %48, %2, %cst_15 {dimension_numbers = #tpu.dot_dimension_numbers<[1], [0], [0], [1], [0, 0, 1, 1], [], []>} : vector<8x32xbf16>, vector<32x32xbf16>, vector<8x32xf32> -> vector<8x32xf32>
    %50 = vector.broadcast %4 : vector<1x32xf32> to vector<8x32xf32>
    %51 = arith.addf %49, %50 : vector<8x32xf32>
    %c0_16 = arith.constant 0 : index
    %c0_17 = arith.constant 0 : index
    %52 = vector.load %arg2[%c0_16, %c0_17] : memref<8x32xf32, #tpu.memory_space<vmem>>, vector<8x32xf32>
    tpu.vector_store %arg2[%c0_16, %c0_17], %51 {strides = array<i32>} : memref<8x32xf32, #tpu.memory_space<vmem>>, vector<8x32xf32>,
    return
  }
}

</mosaic_0001>

<llo_original>
// kernel: rnn_model_forward.1
$region0: #{rnn_model_forward.1}
  #allocation0 [shape = 'u32[]', space=smem, size = 0x4, offset = 0x4, fixed_abs, tag = 'smem constant byte address 0x4 - core index']
  #allocation1 [shape = 'u32[144,128]{1,0:T(1,128)}', space=vmem, size = 0x12000, scoped, tag = 'internal scratch']
  %s0 = inlined_call_operand.vmem [shape: bf16[64,16], index: 0, kind: input, shape index: {}]
  %s1 = inlined_call_operand.vmem [shape: bf16[88,32], index: 1, kind: input, shape index: {}]
  %s2 = inlined_call_operand.vmem [shape: f32[8,32], index: 2, kind: output, shape index: {}]
  %s3 = sld [smem:[#allocation0]]
  $region18: #{rnn_model_forward.1} parent=0
    _
  %s5 = ssub.s32 1, %s3
  %s6 = scalar_select 0, %s5, %s3
  // Predicated region
  $region2: #{rnn_model_forward.1} parent=0 // pred_check
    _
  $region3: #{rnn_model_forward.1} parent=0 // pred_check_branch
    %8 = sbr.rel (0) target = $region5
  $region4: #{rnn_model_forward.1} parent=0 // pred_region
    _
  $region5: #{rnn_model_forward.1} parent=0 // pred_fallthru
    _
  // Predicated region
  $region6: #{rnn_model_forward.1} parent=0 // pred_check
    _
  $region7: #{rnn_model_forward.1} parent=0 // pred_check_branch
    %10 = sbr.rel (0) target = $region9
  $region8: #{rnn_model_forward.1} parent=0 // pred_region
    _
  $region9: #{rnn_model_forward.1} parent=0 // pred_fallthru
    _
  %v12 = vld [vmem:[%s1] sm:$0xf]
  %v13 = vld [vmem:[%s1 + $0x4] sm:$0xf]
  %v14 = vld [vmem:[%s1 + $0x8] sm:$0xf]
  %v15 = vld [vmem:[%s1 + $0xc] sm:$0xf]
  %v16 = vld [vmem:[%s1 + $0x10] sm:$0xf]
  %v17 = vld [vmem:[%s1 + $0x14] sm:$0xf]
  %v18 = vld [vmem:[%s1 + $0x18] sm:$0xf]
  %v19 = vld [vmem:[%s1 + $0x1c] sm:$0xf]
  %v20 = vld [vmem:[%s1 + $0x20] sm:$0xf]
  %v21 = vld [vmem:[%s1 + $0x24] sm:$0xf]
  %v22 = vld [vmem:[%s1 + $0x28] sm:$0x1]
  %v23 = vunpack.c.l.bf16 %v22
  %v24 = vld [vmem:[%s0] sm:$0xf]
  %v25 = vld [vmem:[%s0 + $0x4] sm:$0xf]
  %v26 = vld [vmem:[%s0 + $0x8] sm:$0xf]
  %v27 = vld [vmem:[%s0 + $0xc] sm:$0xf]
  %v28 = vld [vmem:[%s0 + $0x10] sm:$0xf]
  %v29 = vld [vmem:[%s0 + $0x14] sm:$0xf]
  %v30 = vld [vmem:[%s0 + $0x18] sm:$0xf]
  %v31 = vld [vmem:[%s0 + $0x1c] sm:$0xf]
  %v40 = vunpack.c.l.b16 %v24
  %v41 = vunpack.c.l.b16 %v25
  %v42 = vunpack.c.l.b16 %v26
  %v43 = vunpack.c.l.b16 %v27
  %v44 = vunpack.c.l.b16 %v28
  %v45 = vunpack.c.l.b16 %v29
  %v46 = vunpack.c.l.b16 %v30
  %v47 = vunpack.c.l.b16 %v31
  %v48 = vpack.c.b16 %v41, %v40
  %v49 = vpack.c.b16 %v43, %v42
  %v50 = vpack.c.b16 %v45, %v44
  %v51 = vpack.c.b16 %v47, %v46
  %v54 = vunpack.c.l.b16 %v12
  %v55 = vunpack.c.l.b16 %v13
  %v56 = vpack.c.b16 %v55, %v54
  %vm58 = vcmask 130048
  %v60 = vsel %vm58, %v48, 0
  %v63 = vsel %vm58, %v49, 0
  %v66 = vsel %vm58, %v50, 0
  %v69 = vsel %vm58, %v51, 0
  %71 = vmatprep.subr.bf16.mxu0 0
  %72 = vmatpush1.bf16.msra.mxu0 0
  %73 = vmatprep.subr.bf16.mxu0 0
  %74 = vmatpush1.bf16.msra.mxu0 0
  %75 = vmatprep.subr.bf16.mxu0 0
  %76 = vmatpush1.bf16.msra.mxu0 0
  %77 = vmatprep.subr.bf16.mxu0 0
  %78 = vmatpush1.bf16.msra.mxu0 0
  %79 = vmatprep.subr.bf16.mxu0 0
  %80 = vmatpush1.bf16.msra.mxu0 0
  %81 = vmatprep.subr.bf16.mxu0 0
  %82 = vmatpush1.bf16.msra.mxu0 0
  %83 = vmatprep.subr.bf16.mxu0 0
  %84 = vmatpush1.bf16.msra.mxu0 0
  %85 = vmatprep.subr.bf16.mxu0 0
  %86 = vmatpush1.bf16.msra.mxu0 %v56
  %87 = vmatprep.subr.bf16.mxu0 0
  %88 = vmatpush2.bf16.msra.mxu0 0
  %89 = vmatprep.subr.bf16.mxu0 0
  %90 = vmatpush2.bf16.msra.mxu0 0
  %91 = vmatprep.subr.bf16.mxu0 0
  %92 = vmatpush2.bf16.msra.mxu0 0
  %93 = vmatprep.subr.bf16.mxu0 0
  %94 = vmatpush2.bf16.msra.mxu0 0
  %95 = vmatprep.subr.bf16.mxu0 0
  %96 = vmatpush2.bf16.msra.mxu0 0
  %97 = vmatprep.subr.bf16.mxu0 0
  %98 = vmatpush2.bf16.msra.mxu0 0
  %99 = vmatprep.subr.bf16.mxu0 0
  %100 = vmatpush2.bf16.msra.mxu0 0
  %101 = vmatprep.subr.bf16.mxu0 0
  %102 = vmatpush2.bf16.msra.mxu0 0
  %103 = vmatprep.mubr.bf16.mxu0 0
  %104 = vmatmul.mubr.bf16.gmra.mxu0 %v60
  %v105 = vpop.f32.mrf.mxu0
  %v106 = vadd.f32 0.0, %v105
  %v107 = vpop.f32.mrf.mxu0
  %v108 = vpop.f32.mrf.mxu0
  %v109 = vadd.f32 0.0, %v108
  %v110 = vpop.f32.mrf.mxu0
  %111 = vmatprep.mubr.bf16.mxu0 0
  %112 = vmatmul.mubr.bf16.gmra.mxu0 %v63
  %v113 = vpop.f32.mrf.mxu0
  %v114 = vadd.f32 0.0, %v113
  %v115 = vpop.f32.mrf.mxu0
  %v116 = vpop.f32.mrf.mxu0
  %v117 = vadd.f32 0.0, %v116
  %v118 = vpop.f32.mrf.mxu0
  %119 = vmatprep.mubr.bf16.mxu0 0
  %120 = vmatmul.mubr.bf16.gmra.mxu0 %v66
  %v121 = vpop.f32.mrf.mxu0
  %v122 = vadd.f32 0.0, %v121
  %v123 = vpop.f32.mrf.mxu0
  %v124 = vpop.f32.mrf.mxu0
  %v125 = vadd.f32 0.0, %v124
  %v126 = vpop.f32.mrf.mxu0
  %127 = vmatprep.mubr.bf16.mxu0 0
  %128 = vmatmul.mubr.bf16.gmra.mxu0 %v69
  %v129 = vpop.f32.mrf.mxu0
  %v130 = vadd.f32 0.0, %v129
  %v131 = vpop.f32.mrf.mxu0
  %v132 = vpop.f32.mrf.mxu0
  %v133 = vadd.f32 0.0, %v132
  %v134 = vpop.f32.mrf.mxu0
  %135 = vdwg.mxu0
  %v140 = vunpack.c.l.b16 %v14
  %v141 = vunpack.c.l.b16 %v15
  %v142 = vunpack.c.l.b16 %v16
  %v143 = vunpack.c.l.b16 %v17
  %v144 = vpack.c.b16 %v141, %v140
  %v145 = vpack.c.b16 %v143, %v142
  %vm148 = vcmask 261120
  %v150 = vsel %vm148, 0, 0
  %152 = vmatprep.subr.bf16.mxu0 0
  %153 = vmatpush1.bf16.msra.mxu0 0
  %154 = vmatprep.subr.bf16.mxu0 0
  %155 = vmatpush1.bf16.msra.mxu0 0
  %156 = vmatprep.subr.bf16.mxu0 0
  %157 = vmatpush1.bf16.msra.mxu0 0
  %158 = vmatprep.subr.bf16.mxu0 0
  %159 = vmatpush1.bf16.msra.mxu0 0
  %160 = vmatprep.subr.bf16.mxu0 0
  %161 = vmatpush1.bf16.msra.mxu0 0
  %162 = vmatprep.subr.bf16.mxu0 0
  %163 = vmatpush1.bf16.msra.mxu0 0
  %164 = vmatprep.subr.bf16.mxu0 0
  %165 = vmatpush1.bf16.msra.mxu0 %v145
  %166 = vmatprep.subr.bf16.mxu0 0
  %167 = vmatpush1.bf16.msra.mxu0 %v144
  %168 = vmatprep.subr.bf16.mxu0 0
  %169 = vmatpush2.bf16.msra.mxu0 0
  %170 = vmatprep.subr.bf16.mxu0 0
  %171 = vmatpush2.bf16.msra.mxu0 0
  %172 = vmatprep.subr.bf16.mxu0 0
  %173 = vmatpush2.bf16.msra.mxu0 0
  %174 = vmatprep.subr.bf16.mxu0 0
  %175 = vmatpush2.bf16.msra.mxu0 0
  %176 = vmatprep.subr.bf16.mxu0 0
  %177 = vmatpush2.bf16.msra.mxu0 0
  %178 = vmatprep.subr.bf16.mxu0 0
  %179 = vmatpush2.bf16.msra.mxu0 0
  %180 = vmatprep.subr.bf16.mxu0 0
  %181 = vmatpush2.bf16.msra.mxu0 0
  %182 = vmatprep.subr.bf16.mxu0 0
  %183 = vmatpush2.bf16.msra.mxu0 0
  %184 = vmatprep.mubr.bf16.mxu0 0
  %185 = vmatmul.mubr.bf16.gmra.mxu0 %v150
  %v186 = vpop.f32.mrf.mxu0
  %v187 = vadd.f32 0.0, %v186
  %v188 = vpop.f32.mrf.mxu0
  %v189 = vpop.f32.mrf.mxu0
  %v190 = vpop.f32.mrf.mxu0
  %191 = vdwg.mxu0
  %v192 = vadd.f32 %v106, %v187
  %v193 = vtanh.pop %v192
  %v194 = vpack.c.bf16 %v193, %v193
  %v196 = vsel %vm148, %v194, 0
  %198 = vmatprep.subr.bf16.mxu0 0
  %199 = vmatpush1.bf16.msra.mxu0 0
  %200 = vmatprep.subr.bf16.mxu0 0
  %201 = vmatpush1.bf16.msra.mxu0 0
  %202 = vmatprep.subr.bf16.mxu0 0
  %203 = vmatpush1.bf16.msra.mxu0 0
  %204 = vmatprep.subr.bf16.mxu0 0
  %205 = vmatpush1.bf16.msra.mxu0 0
  %206 = vmatprep.subr.bf16.mxu0 0
  %207 = vmatpush1.bf16.msra.mxu0 0
  %208 = vmatprep.subr.bf16.mxu0 0
  %209 = vmatpush1.bf16.msra.mxu0 0
  %210 = vmatprep.subr.bf16.mxu0 0
  %211 = vmatpush1.bf16.msra.mxu0 %v145
  %212 = vmatprep.subr.bf16.mxu0 0
  %213 = vmatpush1.bf16.msra.mxu0 %v144
  %214 = vmatprep.subr.bf16.mxu0 0
  %215 = vmatpush2.bf16.msra.mxu0 0
  %216 = vmatprep.subr.bf16.mxu0 0
  %217 = vmatpush2.bf16.msra.mxu0 0
  %218 = vmatprep.subr.bf16.mxu0 0
  %219 = vmatpush2.bf16.msra.mxu0 0
  %220 = vmatprep.subr.bf16.mxu0 0
  %221 = vmatpush2.bf16.msra.mxu0 0
  %222 = vmatprep.subr.bf16.mxu0 0
  %223 = vmatpush2.bf16.msra.mxu0 0
  %224 = vmatprep.subr.bf16.mxu0 0
  %225 = vmatpush2.bf16.msra.mxu0 0
  %226 = vmatprep.subr.bf16.mxu0 0
  %227 = vmatpush2.bf16.msra.mxu0 0
  %228 = vmatprep.subr.bf16.mxu0 0
  %229 = vmatpush2.bf16.msra.mxu0 0
  %230 = vmatprep.mubr.bf16.mxu0 0
  %231 = vmatmul.mubr.bf16.gmra.mxu0 %v196
  %v232 = vpop.f32.mrf.mxu0
  %v233 = vadd.f32 0.0, %v232
  %v234 = vpop.f32.mrf.mxu0
  %v235 = vpop.f32.mrf.mxu0
  %v236 = vpop.f32.mrf.mxu0
  %237 = vdwg.mxu0
  %v238 = vadd.f32 %v109, %v233
  %v239 = vtanh.pop %v238
  %v240 = vpack.c.bf16 %v239, %v239
  %v242 = vsel %vm148, %v240, 0
  %244 = vmatprep.subr.bf16.mxu0 0
  %245 = vmatpush1.bf16.msra.mxu0 0
  %246 = vmatprep.subr.bf16.mxu0 0
  %247 = vmatpush1.bf16.msra.mxu0 0
  %248 = vmatprep.subr.bf16.mxu0 0
  %249 = vmatpush1.bf16.msra.mxu0 0
  %250 = vmatprep.subr.bf16.mxu0 0
  %251 = vmatpush1.bf16.msra.mxu0 0
  %252 = vmatprep.subr.bf16.mxu0 0
  %253 = vmatpush1.bf16.msra.mxu0 0
  %254 = vmatprep.subr.bf16.mxu0 0
  %255 = vmatpush1.bf16.msra.mxu0 0
  %256 = vmatprep.subr.bf16.mxu0 0
  %257 = vmatpush1.bf16.msra.mxu0 %v145
  %258 = vmatprep.subr.bf16.mxu0 0
  %259 = vmatpush1.bf16.msra.mxu0 %v144
  %260 = vmatprep.subr.bf16.mxu0 0
  %261 = vmatpush2.bf16.msra.mxu0 0
  %262 = vmatprep.subr.bf16.mxu0 0
  %263 = vmatpush2.bf16.msra.mxu0 0
  %264 = vmatprep.subr.bf16.mxu0 0
  %265 = vmatpush2.bf16.msra.mxu0 0
  %266 = vmatprep.subr.bf16.mxu0 0
  %267 = vmatpush2.bf16.msra.mxu0 0
  %268 = vmatprep.subr.bf16.mxu0 0
  %269 = vmatpush2.bf16.msra.mxu0 0
  %270 = vmatprep.subr.bf16.mxu0 0
  %271 = vmatpush2.bf16.msra.mxu0 0
  %272 = vmatprep.subr.bf16.mxu0 0
  %273 = vmatpush2.bf16.msra.mxu0 0
  %274 = vmatprep.subr.bf16.mxu0 0
  %275 = vmatpush2.bf16.msra.mxu0 0
  %276 = vmatprep.mubr.bf16.mxu0 0
  %277 = vmatmul.mubr.bf16.gmra.mxu0 %v242
  %v278 = vpop.f32.mrf.mxu0
  %v279 = vadd.f32 0.0, %v278
  %v280 = vpop.f32.mrf.mxu0
  %v281 = vpop.f32.mrf.mxu0
  %v282 = vpop.f32.mrf.mxu0
  %283 = vdwg.mxu0
  %v284 = vadd.f32 %v114, %v279
  %v285 = vtanh.pop %v284
  %v286 = vpack.c.bf16 %v285, %v285
  %v288 = vsel %vm148, %v286, 0
  %290 = vmatprep.subr.bf16.mxu0 0
  %291 = vmatpush1.bf16.msra.mxu0 0
  %292 = vmatprep.subr.bf16.mxu0 0
  %293 = vmatpush1.bf16.msra.mxu0 0
  %294 = vmatprep.subr.bf16.mxu0 0
  %295 = vmatpush1.bf16.msra.mxu0 0
  %296 = vmatprep.subr.bf16.mxu0 0
  %297 = vmatpush1.bf16.msra.mxu0 0
  %298 = vmatprep.subr.bf16.mxu0 0
  %299 = vmatpush1.bf16.msra.mxu0 0
  %300 = vmatprep.subr.bf16.mxu0 0
  %301 = vmatpush1.bf16.msra.mxu0 0
  %302 = vmatprep.subr.bf16.mxu0 0
  %303 = vmatpush1.bf16.msra.mxu0 %v145
  %304 = vmatprep.subr.bf16.mxu0 0
  %305 = vmatpush1.bf16.msra.mxu0 %v144
  %306 = vmatprep.subr.bf16.mxu0 0
  %307 = vmatpush2.bf16.msra.mxu0 0
  %308 = vmatprep.subr.bf16.mxu0 0
  %309 = vmatpush2.bf16.msra.mxu0 0
  %310 = vmatprep.subr.bf16.mxu0 0
  %311 = vmatpush2.bf16.msra.mxu0 0
  %312 = vmatprep.subr.bf16.mxu0 0
  %313 = vmatpush2.bf16.msra.mxu0 0
  %314 = vmatprep.subr.bf16.mxu0 0
  %315 = vmatpush2.bf16.msra.mxu0 0
  %316 = vmatprep.subr.bf16.mxu0 0
  %317 = vmatpush2.bf16.msra.mxu0 0
  %318 = vmatprep.subr.bf16.mxu0 0
  %319 = vmatpush2.bf16.msra.mxu0 0
  %320 = vmatprep.subr.bf16.mxu0 0
  %321 = vmatpush2.bf16.msra.mxu0 0
  %322 = vmatprep.mubr.bf16.mxu0 0
  %323 = vmatmul.mubr.bf16.gmra.mxu0 %v288
  %v324 = vpop.f32.mrf.mxu0
  %v325 = vadd.f32 0.0, %v324
  %v326 = vpop.f32.mrf.mxu0
  %v327 = vpop.f32.mrf.mxu0
  %v328 = vpop.f32.mrf.mxu0
  %329 = vdwg.mxu0
  %v330 = vadd.f32 %v117, %v325
  %v331 = vtanh.pop %v330
  %v332 = vpack.c.bf16 %v331, %v331
  %v334 = vsel %vm148, %v332, 0
  %336 = vmatprep.subr.bf16.mxu0 0
  %337 = vmatpush1.bf16.msra.mxu0 0
  %338 = vmatprep.subr.bf16.mxu0 0
  %339 = vmatpush1.bf16.msra.mxu0 0
  %340 = vmatprep.subr.bf16.mxu0 0
  %341 = vmatpush1.bf16.msra.mxu0 0
  %342 = vmatprep.subr.bf16.mxu0 0
  %343 = vmatpush1.bf16.msra.mxu0 0
  %344 = vmatprep.subr.bf16.mxu0 0
  %345 = vmatpush1.bf16.msra.mxu0 0
  %346 = vmatprep.subr.bf16.mxu0 0
  %347 = vmatpush1.bf16.msra.mxu0 0
  %348 = vmatprep.subr.bf16.mxu0 0
  %349 = vmatpush1.bf16.msra.mxu0 %v145
  %350 = vmatprep.subr.bf16.mxu0 0
  %351 = vmatpush1.bf16.msra.mxu0 %v144
  %352 = vmatprep.subr.bf16.mxu0 0
  %353 = vmatpush2.bf16.msra.mxu0 0
  %354 = vmatprep.subr.bf16.mxu0 0
  %355 = vmatpush2.bf16.msra.mxu0 0
  %356 = vmatprep.subr.bf16.mxu0 0
  %357 = vmatpush2.bf16.msra.mxu0 0
  %358 = vmatprep.subr.bf16.mxu0 0
  %359 = vmatpush2.bf16.msra.mxu0 0
  %360 = vmatprep.subr.bf16.mxu0 0
  %361 = vmatpush2.bf16.msra.mxu0 0
  %362 = vmatprep.subr.bf16.mxu0 0
  %363 = vmatpush2.bf16.msra.mxu0 0
  %364 = vmatprep.subr.bf16.mxu0 0
  %365 = vmatpush2.bf16.msra.mxu0 0
  %366 = vmatprep.subr.bf16.mxu0 0
  %367 = vmatpush2.bf16.msra.mxu0 0
  %368 = vmatprep.mubr.bf16.mxu0 0
  %369 = vmatmul.mubr.bf16.gmra.mxu0 %v334
  %v370 = vpop.f32.mrf.mxu0
  %v371 = vadd.f32 0.0, %v370
  %v372 = vpop.f32.mrf.mxu0
  %v373 = vpop.f32.mrf.mxu0
  %v374 = vpop.f32.mrf.mxu0
  %375 = vdwg.mxu0
  %v376 = vadd.f32 %v122, %v371
  %v377 = vtanh.pop %v376
  %v378 = vpack.c.bf16 %v377, %v377
  %v380 = vsel %vm148, %v378, 0
  %382 = vmatprep.subr.bf16.mxu0 0
  %383 = vmatpush1.bf16.msra.mxu0 0
  %384 = vmatprep.subr.bf16.mxu0 0
  %385 = vmatpush1.bf16.msra.mxu0 0
  %386 = vmatprep.subr.bf16.mxu0 0
  %387 = vmatpush1.bf16.msra.mxu0 0
  %388 = vmatprep.subr.bf16.mxu0 0
  %389 = vmatpush1.bf16.msra.mxu0 0
  %390 = vmatprep.subr.bf16.mxu0 0
  %391 = vmatpush1.bf16.msra.mxu0 0
  %392 = vmatprep.subr.bf16.mxu0 0
  %393 = vmatpush1.bf16.msra.mxu0 0
  %394 = vmatprep.subr.bf16.mxu0 0
  %395 = vmatpush1.bf16.msra.mxu0 %v145
  %396 = vmatprep.subr.bf16.mxu0 0
  %397 = vmatpush1.bf16.msra.mxu0 %v144
  %398 = vmatprep.subr.bf16.mxu0 0
  %399 = vmatpush2.bf16.msra.mxu0 0
  %400 = vmatprep.subr.bf16.mxu0 0
  %401 = vmatpush2.bf16.msra.mxu0 0
  %402 = vmatprep.subr.bf16.mxu0 0
  %403 = vmatpush2.bf16.msra.mxu0 0
  %404 = vmatprep.subr.bf16.mxu0 0
  %405 = vmatpush2.bf16.msra.mxu0 0
  %406 = vmatprep.subr.bf16.mxu0 0
  %407 = vmatpush2.bf16.msra.mxu0 0
  %408 = vmatprep.subr.bf16.mxu0 0
  %409 = vmatpush2.bf16.msra.mxu0 0
  %410 = vmatprep.subr.bf16.mxu0 0
  %411 = vmatpush2.bf16.msra.mxu0 0
  %412 = vmatprep.subr.bf16.mxu0 0
  %413 = vmatpush2.bf16.msra.mxu0 0
  %414 = vmatprep.mubr.bf16.mxu0 0
  %415 = vmatmul.mubr.bf16.gmra.mxu0 %v380
  %v416 = vpop.f32.mrf.mxu0
  %v417 = vadd.f32 0.0, %v416
  %v418 = vpop.f32.mrf.mxu0
  %v419 = vpop.f32.mrf.mxu0
  %v420 = vpop.f32.mrf.mxu0
  %421 = vdwg.mxu0
  %v422 = vadd.f32 %v125, %v417
  %v423 = vtanh.pop %v422
  %v424 = vpack.c.bf16 %v423, %v423
  %v426 = vsel %vm148, %v424, 0
  %428 = vmatprep.subr.bf16.mxu0 0
  %429 = vmatpush1.bf16.msra.mxu0 0
  %430 = vmatprep.subr.bf16.mxu0 0
  %431 = vmatpush1.bf16.msra.mxu0 0
  %432 = vmatprep.subr.bf16.mxu0 0
  %433 = vmatpush1.bf16.msra.mxu0 0
  %434 = vmatprep.subr.bf16.mxu0 0
  %435 = vmatpush1.bf16.msra.mxu0 0
  %436 = vmatprep.subr.bf16.mxu0 0
  %437 = vmatpush1.bf16.msra.mxu0 0
  %438 = vmatprep.subr.bf16.mxu0 0
  %439 = vmatpush1.bf16.msra.mxu0 0
  %440 = vmatprep.subr.bf16.mxu0 0
  %441 = vmatpush1.bf16.msra.mxu0 %v145
  %442 = vmatprep.subr.bf16.mxu0 0
  %443 = vmatpush1.bf16.msra.mxu0 %v144
  %444 = vmatprep.subr.bf16.mxu0 0
  %445 = vmatpush2.bf16.msra.mxu0 0
  %446 = vmatprep.subr.bf16.mxu0 0
  %447 = vmatpush2.bf16.msra.mxu0 0
  %448 = vmatprep.subr.bf16.mxu0 0
  %449 = vmatpush2.bf16.msra.mxu0 0
  %450 = vmatprep.subr.bf16.mxu0 0
  %451 = vmatpush2.bf16.msra.mxu0 0
  %452 = vmatprep.subr.bf16.mxu0 0
  %453 = vmatpush2.bf16.msra.mxu0 0
  %454 = vmatprep.subr.bf16.mxu0 0
  %455 = vmatpush2.bf16.msra.mxu0 0
  %456 = vmatprep.subr.bf16.mxu0 0
  %457 = vmatpush2.bf16.msra.mxu0 0
  %458 = vmatprep.subr.bf16.mxu0 0
  %459 = vmatpush2.bf16.msra.mxu0 0
  %460 = vmatprep.mubr.bf16.mxu0 0
  %461 = vmatmul.mubr.bf16.gmra.mxu0 %v426
  %v462 = vpop.f32.mrf.mxu0
  %v463 = vadd.f32 0.0, %v462
  %v464 = vpop.f32.mrf.mxu0
  %v465 = vpop.f32.mrf.mxu0
  %v466 = vpop.f32.mrf.mxu0
  %467 = vdwg.mxu0
  %v468 = vadd.f32 %v130, %v463
  %v469 = vtanh.pop %v468
  %v470 = vpack.c.bf16 %v469, %v469
  %v472 = vsel %vm148, %v470, 0
  %474 = vmatprep.subr.bf16.mxu0 0
  %475 = vmatpush1.bf16.msra.mxu0 0
  %476 = vmatprep.subr.bf16.mxu0 0
  %477 = vmatpush1.bf16.msra.mxu0 0
  %478 = vmatprep.subr.bf16.mxu0 0
  %479 = vmatpush1.bf16.msra.mxu0 0
  %480 = vmatprep.subr.bf16.mxu0 0
  %481 = vmatpush1.bf16.msra.mxu0 0
  %482 = vmatprep.subr.bf16.mxu0 0
  %483 = vmatpush1.bf16.msra.mxu0 0
  %484 = vmatprep.subr.bf16.mxu0 0
  %485 = vmatpush1.bf16.msra.mxu0 0
  %486 = vmatprep.subr.bf16.mxu0 0
  %487 = vmatpush1.bf16.msra.mxu0 %v145
  %488 = vmatprep.subr.bf16.mxu0 0
  %489 = vmatpush1.bf16.msra.mxu0 %v144
  %490 = vmatprep.subr.bf16.mxu0 0
  %491 = vmatpush2.bf16.msra.mxu0 0
  %492 = vmatprep.subr.bf16.mxu0 0
  %493 = vmatpush2.bf16.msra.mxu0 0
  %494 = vmatprep.subr.bf16.mxu0 0
  %495 = vmatpush2.bf16.msra.mxu0 0
  %496 = vmatprep.subr.bf16.mxu0 0
  %497 = vmatpush2.bf16.msra.mxu0 0
  %498 = vmatprep.subr.bf16.mxu0 0
  %499 = vmatpush2.bf16.msra.mxu0 0
  %500 = vmatprep.subr.bf16.mxu0 0
  %501 = vmatpush2.bf16.msra.mxu0 0
  %502 = vmatprep.subr.bf16.mxu0 0
  %503 = vmatpush2.bf16.msra.mxu0 0
  %504 = vmatprep.subr.bf16.mxu0 0
  %505 = vmatpush2.bf16.msra.mxu0 0
  %506 = vmatprep.mubr.bf16.mxu0 0
  %507 = vmatmul.mubr.bf16.gmra.mxu0 %v472
  %v508 = vpop.f32.mrf.mxu0
  %v509 = vadd.f32 0.0, %v508
  %v510 = vpop.f32.mrf.mxu0
  %v511 = vpop.f32.mrf.mxu0
  %v512 = vpop.f32.mrf.mxu0
  %513 = vdwg.mxu0
  %v514 = vadd.f32 %v133, %v509
  %v515 = vtanh.pop %v514
  %v516 = vpack.c.bf16 %v515, %v515
  %v517 = vlaneseq
  %v518 = vshrl.u32 %v517, 7
  %v519 = vsub.s32 0, %v518
  %v520 = vrot.slane %v23, %v519
  %v525 = vunpack.c.l.b16 %v18
  %v526 = vunpack.c.l.b16 %v19
  %v527 = vunpack.c.l.b16 %v20
  %v528 = vunpack.c.l.b16 %v21
  %v529 = vpack.c.b16 %v526, %v525
  %v530 = vpack.c.b16 %v528, %v527
  %v534 = vsel %vm148, %v516, 0
  %536 = vmatprep.subr.bf16.mxu0 0
  %537 = vmatpush1.bf16.msra.mxu0 0
  %538 = vmatprep.subr.bf16.mxu0 0
  %539 = vmatpush1.bf16.msra.mxu0 0
  %540 = vmatprep.subr.bf16.mxu0 0
  %541 = vmatpush1.bf16.msra.mxu0 0
  %542 = vmatprep.subr.bf16.mxu0 0
  %543 = vmatpush1.bf16.msra.mxu0 0
  %544 = vmatprep.subr.bf16.mxu0 0
  %545 = vmatpush1.bf16.msra.mxu0 0
  %546 = vmatprep.subr.bf16.mxu0 0
  %547 = vmatpush1.bf16.msra.mxu0 0
  %548 = vmatprep.subr.bf16.mxu0 0
  %549 = vmatpush1.bf16.msra.mxu0 %v530
  %550 = vmatprep.subr.bf16.mxu0 0
  %551 = vmatpush1.bf16.msra.mxu0 %v529
  %552 = vmatprep.subr.bf16.mxu0 0
  %553 = vmatpush2.bf16.msra.mxu0 0
  %554 = vmatprep.subr.bf16.mxu0 0
  %555 = vmatpush2.bf16.msra.mxu0 0
  %556 = vmatprep.subr.bf16.mxu0 0
  %557 = vmatpush2.bf16.msra.mxu0 0
  %558 = vmatprep.subr.bf16.mxu0 0
  %559 = vmatpush2.bf16.msra.mxu0 0
  %560 = vmatprep.subr.bf16.mxu0 0
  %561 = vmatpush2.bf16.msra.mxu0 0
  %562 = vmatprep.subr.bf16.mxu0 0
  %563 = vmatpush2.bf16.msra.mxu0 0
  %564 = vmatprep.subr.bf16.mxu0 0
  %565 = vmatpush2.bf16.msra.mxu0 0
  %566 = vmatprep.subr.bf16.mxu0 0
  %567 = vmatpush2.bf16.msra.mxu0 0
  %568 = vmatprep.mubr.bf16.mxu0 0
  %569 = vmatmul.mubr.bf16.gmra.mxu0 %v534
  %v570 = vpop.f32.mrf.mxu0
  %v571 = vadd.f32 %v520, %v570
  %v572 = vpop.f32.mrf.mxu0
  %v573 = vpop.f32.mrf.mxu0
  %v574 = vpop.f32.mrf.mxu0
  %575 = vdwg.mxu0
  %576 = vst.msk [vmem:[%s2] sm:$0xff] %vm148, %v571
  // Predicated region
  $region10: #{rnn_model_forward.1} parent=0 // pred_check
    _
  $region11: #{rnn_model_forward.1} parent=0 // pred_check_branch
    %578 = sbr.rel (0) target = $region13
  $region12: #{rnn_model_forward.1} parent=0 // pred_region
    _
  $region13: #{rnn_model_forward.1} parent=0 // pred_fallthru
    _
  // Predicated region
  $region14: #{rnn_model_forward.1} parent=0 // pred_check
    _
  $region15: #{rnn_model_forward.1} parent=0 // pred_check_branch
    %580 = sbr.rel (0) target = $region17
  $region16: #{rnn_model_forward.1} parent=0 // pred_region
    _
  $region17: #{rnn_model_forward.1} parent=0 // pred_fallthru
    _

</llo_original>
